<compile_context>
chip_gen: v7x
topology: tpu7x:2x2x1
jax: 0.10.0
libtpu: 0.0.40
codegen_flags: <defaults>
</compile_context>

<pallas_src>
import math

import jax
import jax.numpy as jnp
from jax.experimental import pallas as pl
from jax.experimental.pallas import tpu as pltpu


_NODES_PER_ROW = 128  # nodes packed per lane-dense row -> last dims are k*128


def _atomic_energies_kernel(x_ref, wh_ref, wl_ref, o_ref):
    # x_ref : (TG, 128*E)  128 nodes per row, lane-dense, in x's own dtype.
    # wh/wl : (128*E, 128) bf16 hi/lo split of the block-diagonal energies matrix.
    # o_ref : (TG, 128)    f32 per-node energies (lane-dense, unmasked stores).
    xb = x_ref[...]
    if xb.dtype != jnp.float32:
        xb = xb.astype(jnp.float32)
    xh = xb.astype(jnp.bfloat16)
    xl = (xb - xh.astype(jnp.float32)).astype(jnp.bfloat16)
    # Three bf16 MXU passes == full-precision f32 matvec; the MXU is idle in
    # this DMA-bound kernel, so the extra passes are free.
    acc = jnp.dot(xh, wh_ref[...], preferred_element_type=jnp.float32)
    acc = acc + jnp.dot(xh, wl_ref[...], preferred_element_type=jnp.float32)
    acc = acc + jnp.dot(xl, wh_ref[...], preferred_element_type=jnp.float32)
    o_ref[...] = acc


def atomic_energies_block(x: jax.Array, atomic_energies: jax.Array, *, block_rows: int | None = None):
    """Pallas equivalent of AtomicEnergiesBlock.forward.

    x:                [..., E]  (any float dtype; upcast in-register)
    atomic_energies:  [E]       (kept in float32)
    returns:          [...]     float32 per-node energies
    """
    assert x.ndim >= 2, "x must be [..., n_nodes, n_elements]"
    E = x.shape[-1]
    assert atomic_energies.shape == (E,)

    lead_shape = x.shape[:-1]
    N = math.prod(lead_shape)
    x2d = x.reshape(N, E)                              # free (row-major collapse)

    R = _NODES_PER_ROW
    L = R * E                                          # multiple of 128 for any E

    # Align the node count to 128 so the lane-dense reshape is valid.  This is
    # the only data copy ever made of x, and only when N % 128 != 0 (<=127 rows).
    n_pad = pl.cdiv(N, R) * R
    if n_pad != N:
        x2d = jnp.pad(x2d, ((0, n_pad - N), (0, 0)))
    G = n_pad // R
    xg = x2d.reshape(G, L)                             # free (row-major collapse)

    # Block-diagonal reduction weights: W[r*E + e, s] = atomic_energies[e] * (r==s).
    # Hi/lo bf16 split so three bf16 passes reproduce the f32 result exactly
    # enough (~2^-18) regardless of the backend's default matmul precision.
    e32 = atomic_energies.astype(jnp.float32)
    w = (jnp.eye(R, dtype=jnp.float32)[:, None, :] * e32[None, :, None]).reshape(L, R)
    wh = w.astype(jnp.bfloat16)
    wl = (w - wh.astype(jnp.float32)).astype(jnp.bfloat16)

    # Node-row tile: target ~4 MiB of x per grid step (amortises the
    # ~0.35 us/step pipeline overhead on every generation) while the
    # double-buffered blocks + in-kernel split temporaries stay well under the
    # explicit VMEM limit below (fits v5e / v6e / v7x).
    itemsize = jnp.dtype(x.dtype).itemsize
    if block_rows is None:
        block_rows = max(8, (4 * 1024 * 1024) // (L * itemsize))
    tg = max(8, (int(block_rows) // 8) * 8)
    tg = min(tg, G)                                    # ==G (full dim) for small inputs

    out = pl.pallas_call(
        _atomic_energies_kernel,
        out_shape=jax.ShapeDtypeStruct((G, R), jnp.float32),
        grid_spec=pltpu.PrefetchScalarGridSpec(
            num_scalar_prefetch=0,
            grid=(pl.cdiv(G, tg),),                    # partial trailing block is masked
            in_specs=[
                pl.BlockSpec((tg, L), lambda i: (i, 0)),   # lane-dense node tile
                pl.BlockSpec((L, R), lambda i: (0, 0)),    # energies (hi), resident
                pl.BlockSpec((L, R), lambda i: (0, 0)),    # energies (lo), resident
            ],
            out_specs=pl.BlockSpec((tg, R), lambda i: (i, 0)),
        ),
        compiler_params=pltpu.CompilerParams(
            # Node axis is fully parallel (megacore-shardable).  On v7x this can
            # be promoted to pltpu.CORE_PARALLEL to force both TensorCores.
            dimension_semantics=("parallel",),
            vmem_limit_bytes=40 * 1024 * 1024,
        ),
    )(xg, wh, wl)

    energies = out.reshape(n_pad)                      # free; node order preserved
    if n_pad != N:
        energies = energies[:N]
    return energies.reshape(lead_shape)


def atomic_energies_from_species(species: jax.Array, atomic_energies: jax.Array):
    """Fast path for the standard MACE one-hot input: E-fold less HBM traffic.

    species: [...] int32 element indices per node -> [...] float32 energies.
    XLA's gather is already bandwidth-optimal for 4 B/node, so no Pallas kernel
    is needed here.
    """
    return jnp.take(atomic_energies.astype(jnp.float32), species, axis=0)


if __name__ == "__main__":
    key = jax.random.PRNGKey(0)
    k1, k2, k3, k4 = jax.random.split(key, 4)

    n_elements = 8
    atomic_energies = jax.random.normal(k1, (n_elements,), dtype=jnp.float32)

    # --- Check 1: typical MACE usage (one-hot x), default tiling, ragged N ---
    n_nodes = 200                                       # not a multiple of 128
    species = jax.random.randint(k2, (n_nodes,), 0, n_elements)
    x_onehot = jax.nn.one_hot(species, n_elements, dtype=jnp.float32)

    out = atomic_energies_block(x_onehot, atomic_energies)
    jax.block_until_ready(out)
    ref = x_onehot @ atomic_energies
    assert out.shape == (n_nodes,)
    assert out.dtype == jnp.float32
    assert jnp.allclose(out, ref, atol=1e-4, rtol=1e-4)

    # --- Check 2: dense x, small tile to exercise a multi-step grid with a
    #     masked partial trailing block ---
    n_nodes2 = 1500                                     # G=12 rows, block_rows=8 -> 2 steps
    x_dense = jax.random.normal(k3, (n_nodes2, n_elements), dtype=jnp.float32)
    out2 = atomic_energies_block(x_dense, atomic_energies, block_rows=8)
    jax.block_until_ready(out2)
    ref2 = x_dense @ atomic_energies
    assert out2.shape == (n_nodes2,)
    assert jnp.allclose(out2, ref2, atol=1e-4, rtol=1e-4)

    # --- Check 3: one-hot gather fast path ---
    out3 = atomic_energies_from_species(species, atomic_energies)
    jax.block_until_ready(out3)
    assert jnp.allclose(out3, ref, atol=1e-6, rtol=1e-6)

    print("KERNEL_OK")
</pallas_src>

<mosaic_0001>
module attributes {stable_mosaic.version = 11 : i64} {
  func.func @_atomic_energies_kernel(%arg0: i32, %arg1: memref<2x1024xf32, #tpu.memory_space<vmem>>, %arg2: memref<1024x128xbf16, #tpu.memory_space<vmem>>, %arg3: memref<1024x128xbf16, #tpu.memory_space<vmem>>, %arg4: memref<2x128xf32, #tpu.memory_space<vmem>>) attributes {dimension_semantics = [#tpu.dimension_semantics<parallel>], iteration_bounds = array<i64: 1>, scalar_prefetch = 0 : i64, scratch_operands = 0 : i64, tpu.core_type = #tpu.core_type<tc>, window_params = [{transform_indices = @transform_0, window_bounds = array<i64: 2, 1024>}, {pipeline_mode = #tpu.pipeline_mode<synchronous>, transform_indices = @transform_1, window_bounds = array<i64: 1024, 128>}, {pipeline_mode = #tpu.pipeline_mode<synchronous>, transform_indices = @transform_2, window_bounds = array<i64: 1024, 128>}, {transform_indices = @transform_3, window_bounds = array<i64: 2, 128>}]} {
    %c0 = arith.constant 0 : index
    %c0_0 = arith.constant 0 : index
    %0 = vector.load %arg1[%c0, %c0_0] : memref<2x1024xf32, #tpu.memory_space<vmem>>, vector<2x1024xf32>
    %1 = arith.truncf %0 : vector<2x1024xf32> to vector<2x1024xbf16>
    %2 = arith.extf %1 : vector<2x1024xbf16> to vector<2x1024xf32>
    %3 = arith.subf %0, %2 : vector<2x1024xf32>
    %4 = arith.truncf %3 : vector<2x1024xf32> to vector<2x1024xbf16>
    %c0_1 = arith.constant 0 : index
    %c0_2 = arith.constant 0 : index
    %5 = vector.load %arg2[%c0_1, %c0_2] : memref<1024x128xbf16, #tpu.memory_space<vmem>>, vector<1024x128xbf16>
    %cst = arith.constant dense<0.000000e+00> : vector<2x128xf32>
    %6 = tpu.matmul %1, %5, %cst {dimension_numbers = #tpu.dot_dimension_numbers<[1], [0], [0], [1], [0, 0, 1, 1], [], []>} : vector<2x1024xbf16>, vector<1024x128xbf16>, vector<2x128xf32> -> vector<2x128xf32>
    %c0_3 = arith.constant 0 : index
    %c0_4 = arith.constant 0 : index
    %7 = vector.load %arg3[%c0_3, %c0_4] : memref<1024x128xbf16, #tpu.memory_space<vmem>>, vector<1024x128xbf16>
    %cst_5 = arith.constant dense<0.000000e+00> : vector<2x128xf32>
    %8 = tpu.matmul %1, %7, %cst_5 {dimension_numbers = #tpu.dot_dimension_numbers<[1], [0], [0], [1], [0, 0, 1, 1], [], []>} : vector<2x1024xbf16>, vector<1024x128xbf16>, vector<2x128xf32> -> vector<2x128xf32>
    %9 = arith.addf %6, %8 : vector<2x128xf32>
    %c0_6 = arith.constant 0 : index
    %c0_7 = arith.constant 0 : index
    %10 = vector.load %arg2[%c0_6, %c0_7] : memref<1024x128xbf16, #tpu.memory_space<vmem>>, vector<1024x128xbf16>
    %cst_8 = arith.constant dense<0.000000e+00> : vector<2x128xf32>
    %11 = tpu.matmul %4, %10, %cst_8 {dimension_numbers = #tpu.dot_dimension_numbers<[1], [0], [0], [1], [0, 0, 1, 1], [], []>} : vector<2x1024xbf16>, vector<1024x128xbf16>, vector<2x128xf32> -> vector<2x128xf32>
    %12 = arith.addf %9, %11 : vector<2x128xf32>
    %c0_9 = arith.constant 0 : index
    %c0_10 = arith.constant 0 : index
    %13 = vector.load %arg4[%c0_9, %c0_10] : memref<2x128xf32, #tpu.memory_space<vmem>>, vector<2x128xf32>
    tpu.vector_store %arg4[%c0_9, %c0_10], %12 {strides = array<i32>} : memref<2x128xf32, #tpu.memory_space<vmem>>, vector<2x128xf32>,
    return
  }
  func.func @transform_0(%arg0: i32) -> (i32, i32) {
    %c0_i32 = arith.constant 0 : i32
    %c0_i32_0 = arith.constant 0 : i32
    return %arg0, %c0_i32 : i32, i32
  }
  func.func @transform_1(%arg0: i32) -> (i32, i32) {
    %c0_i32 = arith.constant 0 : i32
    %c0_i32_0 = arith.constant 0 : i32
    %c0_i32_1 = arith.constant 0 : i32
    return %c0_i32, %c0_i32_0 : i32, i32
  }
  func.func @transform_2(%arg0: i32) -> (i32, i32) {
    %c0_i32 = arith.constant 0 : i32
    %c0_i32_0 = arith.constant 0 : i32
    %c0_i32_1 = arith.constant 0 : i32
    return %c0_i32, %c0_i32_0 : i32, i32
  }
  func.func @transform_3(%arg0: i32) -> (i32, i32) {
    %c0_i32 = arith.constant 0 : i32
    %c0_i32_0 = arith.constant 0 : i32
    return %arg0, %c0_i32 : i32, i32
  }
}

</mosaic_0001>

<llo_original>
// kernel: tpu_custom_call.1
$region0: #{tpu_custom_call.1}
  #allocation0 [shape = 'u32[]', space=smem, size = 0x4, offset = 0x4, fixed_abs, tag = 'smem constant byte address 0x4 - core index']
  #allocation1 [shape = 'u32[144,128]{1,0:T(1,128)}', space=vmem, size = 0x12000, scoped, tag = 'internal scratch']
  %s0 = inlined_call_operand.hbm [shape: f32[2,1024], index: 0, kind: input, shape index: {}]
  %s1 = inlined_call_operand.hbm [shape: bf16[1024,128], index: 1, kind: input, shape index: {}]
  %s2 = inlined_call_operand.hbm [shape: bf16[1024,128], index: 2, kind: input, shape index: {}]
  %s3 = inlined_call_operand.hbm [shape: f32[2,128], index: 3, kind: output, shape index: {}]
  %s4 = sld [smem:[#allocation0]]
  $region34: #{tpu_custom_call.1} parent=0
    _
  %s6 = ssub.s32 1, %s4
  %s7 = scalar_select 0, %s6, %s4
  $region1: #{tpu_custom_call.1} parent=0
    #allocation2 [shape = 'u8[8192]{0}', space=vmem, size = 0x2000, scoped, tag = 'input window, operand 0, single buffered']
    #allocation3 [shape = 's32[1]{0}', space=sflag, size = 0x4, scoped, tag = 'scoped memory for tpu_custom_call.1']
    #allocation4 [shape = 's32[1]{0}', space=sflag, size = 0x4, scoped, tag = 'scoped memory for tpu_custom_call.1']
    #allocation5 [shape = 'u8[262144]{0}', space=vmem, size = 0x40000, scoped, tag = 'input window, operand 1, single buffered']
    #allocation6 [shape = 's32[1]{0}', space=sflag, size = 0x4, scoped, tag = 'scoped memory for tpu_custom_call.1']
    #allocation7 [shape = 'u8[262144]{0}', space=vmem, size = 0x40000, scoped, tag = 'input window, operand 2, single buffered']
    #allocation8 [shape = 'u8[1024]{0}', space=vmem, size = 0x400, scoped, tag = 'output window, operand 0, single buffered']
    %8 = vsyncpa [#allocation3], 0
    %9 = vsyncpa [#allocation6], 0
    %10 = vsyncpa [#allocation4], 0
    // Predicated region
    $region2: #{tpu_custom_call.1} parent=1 // pred_check
      _
    $region3: #{tpu_custom_call.1} parent=1 // pred_check_branch
      %12 = sbr.rel (0) target = $region5
    $region4: #{tpu_custom_call.1} parent=1 // pred_region
      %s14 = ssub.s32 256, 256
      %15 = vsyncadd [#allocation3], %s14
      %s17 = sshll.u32 [#allocation2], 4
      %s18 = int_to_ptr.vmem [resolvable:$true] %s17
      %20 = dma.hbm_to_vmem [thread:$0]  %s0, 256, %s18, [#allocation3]
    $region5: #{tpu_custom_call.1} parent=1 // pred_fallthru
      _
    // Predicated region
    $region6: #{tpu_custom_call.1} parent=1 // pred_check
      _
    $region7: #{tpu_custom_call.1} parent=1 // pred_check_branch
      %22 = sbr.rel (0) target = $region9
    $region8: #{tpu_custom_call.1} parent=1 // pred_region
      %s24 = ssub.s32 8192, 8192
      %25 = vsyncadd [#allocation6], %s24
      %s26 = sshll.u32 [#allocation5], 4
      %s27 = int_to_ptr.vmem [resolvable:$true] %s26
      %32 = dma.hbm_to_vmem [thread:$0]  %s1, 8192, %s27, [#allocation6], 64, 64, 4
    $region9: #{tpu_custom_call.1} parent=1 // pred_fallthru
      _
    // Predicated region
    $region10: #{tpu_custom_call.1} parent=1 // pred_check
      _
    $region11: #{tpu_custom_call.1} parent=1 // pred_check_branch
      %34 = sbr.rel (0) target = $region13
    $region12: #{tpu_custom_call.1} parent=1 // pred_region
      %s36 = ssub.s32 8192, 8192
      %37 = vsyncadd [#allocation6], %s36
      %s38 = sshll.u32 [#allocation7], 4
      %s39 = int_to_ptr.vmem [resolvable:$true] %s38
      %44 = dma.hbm_to_vmem [thread:$0]  %s2, 8192, %s39, [#allocation6], 64, 64, 4
    $region13: #{tpu_custom_call.1} parent=1 // pred_fallthru
      _
    // Predicated region
    $region14: #{tpu_custom_call.1} parent=1 // pred_check
      _
    $region15: #{tpu_custom_call.1} parent=1 // pred_check_branch
      %46 = sbr.rel (0) target = $region17
    $region16: #{tpu_custom_call.1} parent=1 // pred_region
      %47 = dma.done [#allocation3], 256
    $region17: #{tpu_custom_call.1} parent=1 // pred_fallthru
      _
    // Predicated region
    $region18: #{tpu_custom_call.1} parent=1 // pred_check
      _
    $region19: #{tpu_custom_call.1} parent=1 // pred_check_branch
      %49 = sbr.rel (0) target = $region21
    $region20: #{tpu_custom_call.1} parent=1 // pred_region
      %50 = dma.done [#allocation6], 8192
    $region21: #{tpu_custom_call.1} parent=1 // pred_fallthru
      _
    // Predicated region
    $region22: #{tpu_custom_call.1} parent=1 // pred_check
      _
    $region23: #{tpu_custom_call.1} parent=1 // pred_check_branch
      %52 = sbr.rel (0) target = $region25
    $region24: #{tpu_custom_call.1} parent=1 // pred_region
      %53 = dma.done [#allocation6], 8192
    $region25: #{tpu_custom_call.1} parent=1 // pred_fallthru
      _
    %v55 = vld [vmem:[#allocation2] sm:$0xff]
    %v56 = vld [vmem:[#allocation2 + $0x8] sm:$0xff]
    %v59 = vcombine.high %v55, %v55
    %v61 = vunpack.c.l.s4 1983009808
    %v62 = vunpack.c.0.s8 %v61
    %v63 = vlaneseq
    %v64 = vshrl.u32 %v63, 7
    %v65 = vsub.s32 %v62, %v64
    %v66 = vrot.slane %v55, %v65
    %v68 = vunpack.c.l.s4 1983009808
    %v69 = vunpack.c.0.s8 %v68
    %v70 = vlaneseq
    %v71 = vshrl.u32 %v70, 7
    %v72 = vsub.s32 %v69, %v71
    %v73 = vrot.slane %v59, %v72
    %v74 = vcombine.high %v66, %v66
    %v75 = vcombine.high %v73, %v73
    %v76 = vcombine.high %v56, %v56
    %v78 = vunpack.c.l.s4 1983009808
    %v79 = vunpack.c.0.s8 %v78
    %v80 = vlaneseq
    %v81 = vshrl.u32 %v80, 7
    %v82 = vsub.s32 %v79, %v81
    %v83 = vrot.slane %v56, %v82
    %v85 = vunpack.c.l.s4 1983009808
    %v86 = vunpack.c.0.s8 %v85
    %v87 = vlaneseq
    %v88 = vshrl.u32 %v87, 7
    %v89 = vsub.s32 %v86, %v88
    %v90 = vrot.slane %v76, %v89
    %v91 = vcombine.high %v83, %v83
    %v92 = vcombine.high %v90, %v90
    %v101 = vpack.c.bf16 %v66, %v66
    %v102 = vpack.c.bf16 %v74, %v74
    %v103 = vpack.c.bf16 %v73, %v73
    %v104 = vpack.c.bf16 %v75, %v75
    %v105 = vpack.c.bf16 %v83, %v83
    %v106 = vpack.c.bf16 %v91, %v91
    %v107 = vpack.c.bf16 %v90, %v90
    %v108 = vpack.c.bf16 %v92, %v92
    %v109 = vunpack.c.l.bf16 %v101
    %v110 = vunpack.c.l.bf16 %v102
    %v111 = vunpack.c.l.bf16 %v103
    %v112 = vunpack.c.l.bf16 %v104
    %v113 = vunpack.c.l.bf16 %v105
    %v114 = vunpack.c.l.bf16 %v106
    %v115 = vunpack.c.l.bf16 %v107
    %v116 = vunpack.c.l.bf16 %v108
    %v125 = vcombine.low %v109, %v110
    %v126 = vcombine.low %v111, %v112
    %v128 = vunpack.c.l.s4 1983009808
    %v129 = vunpack.c.0.s8 %v128
    %v130 = vlaneseq
    %v131 = vshrl.u32 %v130, 7
    %v132 = vsub.s32 %v129, %v131
    %v133 = vrot.slane %v125, %v132
    %v135 = vunpack.c.l.s4 1983009808
    %v136 = vunpack.c.0.s8 %v135
    %v137 = vlaneseq
    %v138 = vshrl.u32 %v137, 7
    %v139 = vsub.s32 %v136, %v138
    %v140 = vrot.slane %v126, %v139
    %v141 = vcombine.low %v133, %v140
    %v142 = vcombine.low %v113, %v114
    %v143 = vcombine.low %v115, %v116
    %v145 = vunpack.c.l.s4 1983009808
    %v146 = vunpack.c.0.s8 %v145
    %v147 = vlaneseq
    %v148 = vshrl.u32 %v147, 7
    %v149 = vsub.s32 %v146, %v148
    %v150 = vrot.slane %v142, %v149
    %v152 = vunpack.c.l.s4 1983009808
    %v153 = vunpack.c.0.s8 %v152
    %v154 = vlaneseq
    %v155 = vshrl.u32 %v154, 7
    %v156 = vsub.s32 %v153, %v155
    %v157 = vrot.slane %v143, %v156
    %v158 = vcombine.low %v150, %v157
    %v161 = vsub.f32 %v55, %v141
    %v162 = vsub.f32 %v56, %v158
    %v165 = vcombine.high %v161, %v161
    %v167 = vunpack.c.l.s4 1983009808
    %v168 = vunpack.c.0.s8 %v167
    %v169 = vlaneseq
    %v170 = vshrl.u32 %v169, 7
    %v171 = vsub.s32 %v168, %v170
    %v172 = vrot.slane %v161, %v171
    %v174 = vunpack.c.l.s4 1983009808
    %v175 = vunpack.c.0.s8 %v174
    %v176 = vlaneseq
    %v177 = vshrl.u32 %v176, 7
    %v178 = vsub.s32 %v175, %v177
    %v179 = vrot.slane %v165, %v178
    %v180 = vcombine.high %v172, %v172
    %v181 = vcombine.high %v179, %v179
    %v182 = vcombine.high %v162, %v162
    %v184 = vunpack.c.l.s4 1983009808
    %v185 = vunpack.c.0.s8 %v184
    %v186 = vlaneseq
    %v187 = vshrl.u32 %v186, 7
    %v188 = vsub.s32 %v185, %v187
    %v189 = vrot.slane %v162, %v188
    %v191 = vunpack.c.l.s4 1983009808
    %v192 = vunpack.c.0.s8 %v191
    %v193 = vlaneseq
    %v194 = vshrl.u32 %v193, 7
    %v195 = vsub.s32 %v192, %v194
    %v196 = vrot.slane %v182, %v195
    %v197 = vcombine.high %v189, %v189
    %v198 = vcombine.high %v196, %v196
    %v207 = vpack.c.bf16 %v172, %v172
    %v208 = vpack.c.bf16 %v180, %v180
    %v209 = vpack.c.bf16 %v179, %v179
    %v210 = vpack.c.bf16 %v181, %v181
    %v211 = vpack.c.bf16 %v189, %v189
    %v212 = vpack.c.bf16 %v197, %v197
    %v213 = vpack.c.bf16 %v196, %v196
    %v214 = vpack.c.bf16 %v198, %v198
    %v215 = vld [vmem:[#allocation5] sm:$0xf]
    %v216 = vld [vmem:[#allocation5 + $0x4] sm:$0xf]
    %v217 = vld [vmem:[#allocation5 + $0x8] sm:$0xf]
    %v218 = vld [vmem:[#allocation5 + $0xc] sm:$0xf]
    %v219 = vld [vmem:[#allocation5 + $0x10] sm:$0xf]
    %v220 = vld [vmem:[#allocation5 + $0x14] sm:$0xf]
    %v221 = vld [vmem:[#allocation5 + $0x18] sm:$0xf]
    %v222 = vld [vmem:[#allocation5 + $0x1c] sm:$0xf]
    %v223 = vld [vmem:[#allocation5 + $0x20] sm:$0xf]
    %v224 = vld [vmem:[#allocation5 + $0x24] sm:$0xf]
    %v225 = vld [vmem:[#allocation5 + $0x28] sm:$0xf]
    %v226 = vld [vmem:[#allocation5 + $0x2c] sm:$0xf]
    %v227 = vld [vmem:[#allocation5 + $0x30] sm:$0xf]
    %v228 = vld [vmem:[#allocation5 + $0x34] sm:$0xf]
    %v229 = vld [vmem:[#allocation5 + $0x38] sm:$0xf]
    %v230 = vld [vmem:[#allocation5 + $0x3c] sm:$0xf]
    %v231 = vld [vmem:[#allocation5 + $0x40] sm:$0xf]
    %v232 = vld [vmem:[#allocation5 + $0x44] sm:$0xf]
    %v233 = vld [vmem:[#allocation5 + $0x48] sm:$0xf]
    %v234 = vld [vmem:[#allocation5 + $0x4c] sm:$0xf]
    %v235 = vld [vmem:[#allocation5 + $0x50] sm:$0xf]
    %v236 = vld [vmem:[#allocation5 + $0x54] sm:$0xf]
    %v237 = vld [vmem:[#allocation5 + $0x58] sm:$0xf]
    %v238 = vld [vmem:[#allocation5 + $0x5c] sm:$0xf]
    %v239 = vld [vmem:[#allocation5 + $0x60] sm:$0xf]
    %v240 = vld [vmem:[#allocation5 + $0x64] sm:$0xf]
    %v241 = vld [vmem:[#allocation5 + $0x68] sm:$0xf]
    %v242 = vld [vmem:[#allocation5 + $0x6c] sm:$0xf]
    %v243 = vld [vmem:[#allocation5 + $0x70] sm:$0xf]
    %v244 = vld [vmem:[#allocation5 + $0x74] sm:$0xf]
    %v245 = vld [vmem:[#allocation5 + $0x78] sm:$0xf]
    %v246 = vld [vmem:[#allocation5 + $0x7c] sm:$0xf]
    %v247 = vld [vmem:[#allocation5 + $0x80] sm:$0xf]
    %v248 = vld [vmem:[#allocation5 + $0x84] sm:$0xf]
    %v249 = vld [vmem:[#allocation5 + $0x88] sm:$0xf]
    %v250 = vld [vmem:[#allocation5 + $0x8c] sm:$0xf]
    %v251 = vld [vmem:[#allocation5 + $0x90] sm:$0xf]
    %v252 = vld [vmem:[#allocation5 + $0x94] sm:$0xf]
    %v253 = vld [vmem:[#allocation5 + $0x98] sm:$0xf]
    %v254 = vld [vmem:[#allocation5 + $0x9c] sm:$0xf]
    %v255 = vld [vmem:[#allocation5 + $0xa0] sm:$0xf]
    %v256 = vld [vmem:[#allocation5 + $0xa4] sm:$0xf]
    %v257 = vld [vmem:[#allocation5 + $0xa8] sm:$0xf]
    %v258 = vld [vmem:[#allocation5 + $0xac] sm:$0xf]
    %v259 = vld [vmem:[#allocation5 + $0xb0] sm:$0xf]
    %v260 = vld [vmem:[#allocation5 + $0xb4] sm:$0xf]
    %v261 = vld [vmem:[#allocation5 + $0xb8] sm:$0xf]
    %v262 = vld [vmem:[#allocation5 + $0xbc] sm:$0xf]
    %v263 = vld [vmem:[#allocation5 + $0xc0] sm:$0xf]
    %v264 = vld [vmem:[#allocation5 + $0xc4] sm:$0xf]
    %v265 = vld [vmem:[#allocation5 + $0xc8] sm:$0xf]
    %v266 = vld [vmem:[#allocation5 + $0xcc] sm:$0xf]
    %v267 = vld [vmem:[#allocation5 + $0xd0] sm:$0xf]
    %v268 = vld [vmem:[#allocation5 + $0xd4] sm:$0xf]
    %v269 = vld [vmem:[#allocation5 + $0xd8] sm:$0xf]
    %v270 = vld [vmem:[#allocation5 + $0xdc] sm:$0xf]
    %v271 = vld [vmem:[#allocation5 + $0xe0] sm:$0xf]
    %v272 = vld [vmem:[#allocation5 + $0xe4] sm:$0xf]
    %v273 = vld [vmem:[#allocation5 + $0xe8] sm:$0xf]
    %v274 = vld [vmem:[#allocation5 + $0xec] sm:$0xf]
    %v275 = vld [vmem:[#allocation5 + $0xf0] sm:$0xf]
    %v276 = vld [vmem:[#allocation5 + $0xf4] sm:$0xf]
    %v277 = vld [vmem:[#allocation5 + $0xf8] sm:$0xf]
    %v278 = vld [vmem:[#allocation5 + $0xfc] sm:$0xf]
    %v279 = vld [vmem:[#allocation5 + $0x100] sm:$0xf]
    %v280 = vld [vmem:[#allocation5 + $0x104] sm:$0xf]
    %v281 = vld [vmem:[#allocation5 + $0x108] sm:$0xf]
    %v282 = vld [vmem:[#allocation5 + $0x10c] sm:$0xf]
    %v283 = vld [vmem:[#allocation5 + $0x110] sm:$0xf]
    %v284 = vld [vmem:[#allocation5 + $0x114] sm:$0xf]
    %v285 = vld [vmem:[#allocation5 + $0x118] sm:$0xf]
    %v286 = vld [vmem:[#allocation5 + $0x11c] sm:$0xf]
    %v287 = vld [vmem:[#allocation5 + $0x120] sm:$0xf]
    %v288 = vld [vmem:[#allocation5 + $0x124] sm:$0xf]
    %v289 = vld [vmem:[#allocation5 + $0x128] sm:$0xf]
    %v290 = vld [vmem:[#allocation5 + $0x12c] sm:$0xf]
    %v291 = vld [vmem:[#allocation5 + $0x130] sm:$0xf]
    %v292 = vld [vmem:[#allocation5 + $0x134] sm:$0xf]
    %v293 = vld [vmem:[#allocation5 + $0x138] sm:$0xf]
    %v294 = vld [vmem:[#allocation5 + $0x13c] sm:$0xf]
    %v295 = vld [vmem:[#allocation5 + $0x140] sm:$0xf]
    %v296 = vld [vmem:[#allocation5 + $0x144] sm:$0xf]
    %v297 = vld [vmem:[#allocation5 + $0x148] sm:$0xf]
    %v298 = vld [vmem:[#allocation5 + $0x14c] sm:$0xf]
    %v299 = vld [vmem:[#allocation5 + $0x150] sm:$0xf]
    %v300 = vld [vmem:[#allocation5 + $0x154] sm:$0xf]
    %v301 = vld [vmem:[#allocation5 + $0x158] sm:$0xf]
    %v302 = vld [vmem:[#allocation5 + $0x15c] sm:$0xf]
    %v303 = vld [vmem:[#allocation5 + $0x160] sm:$0xf]
    %v304 = vld [vmem:[#allocation5 + $0x164] sm:$0xf]
    %v305 = vld [vmem:[#allocation5 + $0x168] sm:$0xf]
    %v306 = vld [vmem:[#allocation5 + $0x16c] sm:$0xf]
    %v307 = vld [vmem:[#allocation5 + $0x170] sm:$0xf]
    %v308 = vld [vmem:[#allocation5 + $0x174] sm:$0xf]
    %v309 = vld [vmem:[#allocation5 + $0x178] sm:$0xf]
    %v310 = vld [vmem:[#allocation5 + $0x17c] sm:$0xf]
    %v311 = vld [vmem:[#allocation5 + $0x180] sm:$0xf]
    %v312 = vld [vmem:[#allocation5 + $0x184] sm:$0xf]
    %v313 = vld [vmem:[#allocation5 + $0x188] sm:$0xf]
    %v314 = vld [vmem:[#allocation5 + $0x18c] sm:$0xf]
    %v315 = vld [vmem:[#allocation5 + $0x190] sm:$0xf]
    %v316 = vld [vmem:[#allocation5 + $0x194] sm:$0xf]
    %v317 = vld [vmem:[#allocation5 + $0x198] sm:$0xf]
    %v318 = vld [vmem:[#allocation5 + $0x19c] sm:$0xf]
    %v319 = vld [vmem:[#allocation5 + $0x1a0] sm:$0xf]
    %v320 = vld [vmem:[#allocation5 + $0x1a4] sm:$0xf]
    %v321 = vld [vmem:[#allocation5 + $0x1a8] sm:$0xf]
    %v322 = vld [vmem:[#allocation5 + $0x1ac] sm:$0xf]
    %v323 = vld [vmem:[#allocation5 + $0x1b0] sm:$0xf]
    %v324 = vld [vmem:[#allocation5 + $0x1b4] sm:$0xf]
    %v325 = vld [vmem:[#allocation5 + $0x1b8] sm:$0xf]
    %v326 = vld [vmem:[#allocation5 + $0x1bc] sm:$0xf]
    %v327 = vld [vmem:[#allocation5 + $0x1c0] sm:$0xf]
    %v328 = vld [vmem:[#allocation5 + $0x1c4] sm:$0xf]
    %v329 = vld [vmem:[#allocation5 + $0x1c8] sm:$0xf]
    %v330 = vld [vmem:[#allocation5 + $0x1cc] sm:$0xf]
    %v331 = vld [vmem:[#allocation5 + $0x1d0] sm:$0xf]
    %v332 = vld [vmem:[#allocation5 + $0x1d4] sm:$0xf]
    %v333 = vld [vmem:[#allocation5 + $0x1d8] sm:$0xf]
    %v334 = vld [vmem:[#allocation5 + $0x1dc] sm:$0xf]
    %v335 = vld [vmem:[#allocation5 + $0x1e0] sm:$0xf]
    %v336 = vld [vmem:[#allocation5 + $0x1e4] sm:$0xf]
    %v337 = vld [vmem:[#allocation5 + $0x1e8] sm:$0xf]
    %v338 = vld [vmem:[#allocation5 + $0x1ec] sm:$0xf]
    %v339 = vld [vmem:[#allocation5 + $0x1f0] sm:$0xf]
    %v340 = vld [vmem:[#allocation5 + $0x1f4] sm:$0xf]
    %v341 = vld [vmem:[#allocation5 + $0x1f8] sm:$0xf]
    %v342 = vld [vmem:[#allocation5 + $0x1fc] sm:$0xf]
    %v343 = vld [vmem:[#allocation7] sm:$0xf]
    %v344 = vld [vmem:[#allocation7 + $0x4] sm:$0xf]
    %v345 = vld [vmem:[#allocation7 + $0x8] sm:$0xf]
    %v346 = vld [vmem:[#allocation7 + $0xc] sm:$0xf]
    %v347 = vld [vmem:[#allocation7 + $0x10] sm:$0xf]
    %v348 = vld [vmem:[#allocation7 + $0x14] sm:$0xf]
    %v349 = vld [vmem:[#allocation7 + $0x18] sm:$0xf]
    %v350 = vld [vmem:[#allocation7 + $0x1c] sm:$0xf]
    %v351 = vld [vmem:[#allocation7 + $0x20] sm:$0xf]
    %v352 = vld [vmem:[#allocation7 + $0x24] sm:$0xf]
    %v353 = vld [vmem:[#allocation7 + $0x28] sm:$0xf]
    %v354 = vld [vmem:[#allocation7 + $0x2c] sm:$0xf]
    %v355 = vld [vmem:[#allocation7 + $0x30] sm:$0xf]
    %v356 = vld [vmem:[#allocation7 + $0x34] sm:$0xf]
    %v357 = vld [vmem:[#allocation7 + $0x38] sm:$0xf]
    %v358 = vld [vmem:[#allocation7 + $0x3c] sm:$0xf]
    %v359 = vld [vmem:[#allocation7 + $0x40] sm:$0xf]
    %v360 = vld [vmem:[#allocation7 + $0x44] sm:$0xf]
    %v361 = vld [vmem:[#allocation7 + $0x48] sm:$0xf]
    %v362 = vld [vmem:[#allocation7 + $0x4c] sm:$0xf]
    %v363 = vld [vmem:[#allocation7 + $0x50] sm:$0xf]
    %v364 = vld [vmem:[#allocation7 + $0x54] sm:$0xf]
    %v365 = vld [vmem:[#allocation7 + $0x58] sm:$0xf]
    %v366 = vld [vmem:[#allocation7 + $0x5c] sm:$0xf]
    %v367 = vld [vmem:[#allocation7 + $0x60] sm:$0xf]
    %v368 = vld [vmem:[#allocation7 + $0x64] sm:$0xf]
    %v369 = vld [vmem:[#allocation7 + $0x68] sm:$0xf]
    %v370 = vld [vmem:[#allocation7 + $0x6c] sm:$0xf]
    %v371 = vld [vmem:[#allocation7 + $0x70] sm:$0xf]
    %v372 = vld [vmem:[#allocation7 + $0x74] sm:$0xf]
    %v373 = vld [vmem:[#allocation7 + $0x78] sm:$0xf]
    %v374 = vld [vmem:[#allocation7 + $0x7c] sm:$0xf]
    %v375 = vld [vmem:[#allocation7 + $0x80] sm:$0xf]
    %v376 = vld [vmem:[#allocation7 + $0x84] sm:$0xf]
    %v377 = vld [vmem:[#allocation7 + $0x88] sm:$0xf]
    %v378 = vld [vmem:[#allocation7 + $0x8c] sm:$0xf]
    %v379 = vld [vmem:[#allocation7 + $0x90] sm:$0xf]
    %v380 = vld [vmem:[#allocation7 + $0x94] sm:$0xf]
    %v381 = vld [vmem:[#allocation7 + $0x98] sm:$0xf]
    %v382 = vld [vmem:[#allocation7 + $0x9c] sm:$0xf]
    %v383 = vld [vmem:[#allocation7 + $0xa0] sm:$0xf]
    %v384 = vld [vmem:[#allocation7 + $0xa4] sm:$0xf]
    %v385 = vld [vmem:[#allocation7 + $0xa8] sm:$0xf]
    %v386 = vld [vmem:[#allocation7 + $0xac] sm:$0xf]
    %v387 = vld [vmem:[#allocation7 + $0xb0] sm:$0xf]
    %v388 = vld [vmem:[#allocation7 + $0xb4] sm:$0xf]
    %v389 = vld [vmem:[#allocation7 + $0xb8] sm:$0xf]
    %v390 = vld [vmem:[#allocation7 + $0xbc] sm:$0xf]
    %v391 = vld [vmem:[#allocation7 + $0xc0] sm:$0xf]
    %v392 = vld [vmem:[#allocation7 + $0xc4] sm:$0xf]
    %v393 = vld [vmem:[#allocation7 + $0xc8] sm:$0xf]
    %v394 = vld [vmem:[#allocation7 + $0xcc] sm:$0xf]
    %v395 = vld [vmem:[#allocation7 + $0xd0] sm:$0xf]
    %v396 = vld [vmem:[#allocation7 + $0xd4] sm:$0xf]
    %v397 = vld [vmem:[#allocation7 + $0xd8] sm:$0xf]
    %v398 = vld [vmem:[#allocation7 + $0xdc] sm:$0xf]
    %v399 = vld [vmem:[#allocation7 + $0xe0] sm:$0xf]
    %v400 = vld [vmem:[#allocation7 + $0xe4] sm:$0xf]
    %v401 = vld [vmem:[#allocation7 + $0xe8] sm:$0xf]
    %v402 = vld [vmem:[#allocation7 + $0xec] sm:$0xf]
    %v403 = vld [vmem:[#allocation7 + $0xf0] sm:$0xf]
    %v404 = vld [vmem:[#allocation7 + $0xf4] sm:$0xf]
    %v405 = vld [vmem:[#allocation7 + $0xf8] sm:$0xf]
    %v406 = vld [vmem:[#allocation7 + $0xfc] sm:$0xf]
    %v407 = vld [vmem:[#allocation7 + $0x100] sm:$0xf]
    %v408 = vld [vmem:[#allocation7 + $0x104] sm:$0xf]
    %v409 = vld [vmem:[#allocation7 + $0x108] sm:$0xf]
    %v410 = vld [vmem:[#allocation7 + $0x10c] sm:$0xf]
    %v411 = vld [vmem:[#allocation7 + $0x110] sm:$0xf]
    %v412 = vld [vmem:[#allocation7 + $0x114] sm:$0xf]
    %v413 = vld [vmem:[#allocation7 + $0x118] sm:$0xf]
    %v414 = vld [vmem:[#allocation7 + $0x11c] sm:$0xf]
    %v415 = vld [vmem:[#allocation7 + $0x120] sm:$0xf]
    %v416 = vld [vmem:[#allocation7 + $0x124] sm:$0xf]
    %v417 = vld [vmem:[#allocation7 + $0x128] sm:$0xf]
    %v418 = vld [vmem:[#allocation7 + $0x12c] sm:$0xf]
    %v419 = vld [vmem:[#allocation7 + $0x130] sm:$0xf]
    %v420 = vld [vmem:[#allocation7 + $0x134] sm:$0xf]
    %v421 = vld [vmem:[#allocation7 + $0x138] sm:$0xf]
    %v422 = vld [vmem:[#allocation7 + $0x13c] sm:$0xf]
    %v423 = vld [vmem:[#allocation7 + $0x140] sm:$0xf]
    %v424 = vld [vmem:[#allocation7 + $0x144] sm:$0xf]
    %v425 = vld [vmem:[#allocation7 + $0x148] sm:$0xf]
    %v426 = vld [vmem:[#allocation7 + $0x14c] sm:$0xf]
    %v427 = vld [vmem:[#allocation7 + $0x150] sm:$0xf]
    %v428 = vld [vmem:[#allocation7 + $0x154] sm:$0xf]
    %v429 = vld [vmem:[#allocation7 + $0x158] sm:$0xf]
    %v430 = vld [vmem:[#allocation7 + $0x15c] sm:$0xf]
    %v431 = vld [vmem:[#allocation7 + $0x160] sm:$0xf]
    %v432 = vld [vmem:[#allocation7 + $0x164] sm:$0xf]
    %v433 = vld [vmem:[#allocation7 + $0x168] sm:$0xf]
    %v434 = vld [vmem:[#allocation7 + $0x16c] sm:$0xf]
    %v435 = vld [vmem:[#allocation7 + $0x170] sm:$0xf]
    %v436 = vld [vmem:[#allocation7 + $0x174] sm:$0xf]
    %v437 = vld [vmem:[#allocation7 + $0x178] sm:$0xf]
    %v438 = vld [vmem:[#allocation7 + $0x17c] sm:$0xf]
    %v439 = vld [vmem:[#allocation7 + $0x180] sm:$0xf]
    %v440 = vld [vmem:[#allocation7 + $0x184] sm:$0xf]
    %v441 = vld [vmem:[#allocation7 + $0x188] sm:$0xf]
    %v442 = vld [vmem:[#allocation7 + $0x18c] sm:$0xf]
    %v443 = vld [vmem:[#allocation7 + $0x190] sm:$0xf]
    %v444 = vld [vmem:[#allocation7 + $0x194] sm:$0xf]
    %v445 = vld [vmem:[#allocation7 + $0x198] sm:$0xf]
    %v446 = vld [vmem:[#allocation7 + $0x19c] sm:$0xf]
    %v447 = vld [vmem:[#allocation7 + $0x1a0] sm:$0xf]
    %v448 = vld [vmem:[#allocation7 + $0x1a4] sm:$0xf]
    %v449 = vld [vmem:[#allocation7 + $0x1a8] sm:$0xf]
    %v450 = vld [vmem:[#allocation7 + $0x1ac] sm:$0xf]
    %v451 = vld [vmem:[#allocation7 + $0x1b0] sm:$0xf]
    %v452 = vld [vmem:[#allocation7 + $0x1b4] sm:$0xf]
    %v453 = vld [vmem:[#allocation7 + $0x1b8] sm:$0xf]
    %v454 = vld [vmem:[#allocation7 + $0x1bc] sm:$0xf]
    %v455 = vld [vmem:[#allocation7 + $0x1c0] sm:$0xf]
    %v456 = vld [vmem:[#allocation7 + $0x1c4] sm:$0xf]
    %v457 = vld [vmem:[#allocation7 + $0x1c8] sm:$0xf]
    %v458 = vld [vmem:[#allocation7 + $0x1cc] sm:$0xf]
    %v459 = vld [vmem:[#allocation7 + $0x1d0] sm:$0xf]
    %v460 = vld [vmem:[#allocation7 + $0x1d4] sm:$0xf]
    %v461 = vld [vmem:[#allocation7 + $0x1d8] sm:$0xf]
    %v462 = vld [vmem:[#allocation7 + $0x1dc] sm:$0xf]
    %v463 = vld [vmem:[#allocation7 + $0x1e0] sm:$0xf]
    %v464 = vld [vmem:[#allocation7 + $0x1e4] sm:$0xf]
    %v465 = vld [vmem:[#allocation7 + $0x1e8] sm:$0xf]
    %v466 = vld [vmem:[#allocation7 + $0x1ec] sm:$0xf]
    %v467 = vld [vmem:[#allocation7 + $0x1f0] sm:$0xf]
    %v468 = vld [vmem:[#allocation7 + $0x1f4] sm:$0xf]
    %v469 = vld [vmem:[#allocation7 + $0x1f8] sm:$0xf]
    %v470 = vld [vmem:[#allocation7 + $0x1fc] sm:$0xf]
    %v599 = vunpack.c.l.b16 %v343
    %v600 = vunpack.c.l.b16 %v344
    %v601 = vunpack.c.l.b16 %v345
    %v602 = vunpack.c.l.b16 %v346
    %v603 = vunpack.c.l.b16 %v347
    %v604 = vunpack.c.l.b16 %v348
    %v605 = vunpack.c.l.b16 %v349
    %v606 = vunpack.c.l.b16 %v350
    %v607 = vunpack.c.l.b16 %v351
    %v608 = vunpack.c.l.b16 %v352
    %v609 = vunpack.c.l.b16 %v353
    %v610 = vunpack.c.l.b16 %v354
    %v611 = vunpack.c.l.b16 %v355
    %v612 = vunpack.c.l.b16 %v356
    %v613 = vunpack.c.l.b16 %v357
    %v614 = vunpack.c.l.b16 %v358
    %v615 = vunpack.c.l.b16 %v359
    %v616 = vunpack.c.l.b16 %v360
    %v617 = vunpack.c.l.b16 %v361
    %v618 = vunpack.c.l.b16 %v362
    %v619 = vunpack.c.l.b16 %v363
    %v620 = vunpack.c.l.b16 %v364
    %v621 = vunpack.c.l.b16 %v365
    %v622 = vunpack.c.l.b16 %v366
    %v623 = vunpack.c.l.b16 %v367
    %v624 = vunpack.c.l.b16 %v368
    %v625 = vunpack.c.l.b16 %v369
    %v626 = vunpack.c.l.b16 %v370
    %v627 = vunpack.c.l.b16 %v371
    %v628 = vunpack.c.l.b16 %v372
    %v629 = vunpack.c.l.b16 %v373
    %v630 = vunpack.c.l.b16 %v374
    %v631 = vunpack.c.l.b16 %v375
    %v632 = vunpack.c.l.b16 %v376
    %v633 = vunpack.c.l.b16 %v377
    %v634 = vunpack.c.l.b16 %v378
    %v635 = vunpack.c.l.b16 %v379
    %v636 = vunpack.c.l.b16 %v380
    %v637 = vunpack.c.l.b16 %v381
    %v638 = vunpack.c.l.b16 %v382
    %v639 = vunpack.c.l.b16 %v383
    %v640 = vunpack.c.l.b16 %v384
    %v641 = vunpack.c.l.b16 %v385
    %v642 = vunpack.c.l.b16 %v386
    %v643 = vunpack.c.l.b16 %v387
    %v644 = vunpack.c.l.b16 %v388
    %v645 = vunpack.c.l.b16 %v389
    %v646 = vunpack.c.l.b16 %v390
    %v647 = vunpack.c.l.b16 %v391
    %v648 = vunpack.c.l.b16 %v392
    %v649 = vunpack.c.l.b16 %v393
    %v650 = vunpack.c.l.b16 %v394
    %v651 = vunpack.c.l.b16 %v395
    %v652 = vunpack.c.l.b16 %v396
    %v653 = vunpack.c.l.b16 %v397
    %v654 = vunpack.c.l.b16 %v398
    %v655 = vunpack.c.l.b16 %v399
    %v656 = vunpack.c.l.b16 %v400
    %v657 = vunpack.c.l.b16 %v401
    %v658 = vunpack.c.l.b16 %v402
    %v659 = vunpack.c.l.b16 %v403
    %v660 = vunpack.c.l.b16 %v404
    %v661 = vunpack.c.l.b16 %v405
    %v662 = vunpack.c.l.b16 %v406
    %v663 = vunpack.c.l.b16 %v407
    %v664 = vunpack.c.l.b16 %v408
    %v665 = vunpack.c.l.b16 %v409
    %v666 = vunpack.c.l.b16 %v410
    %v667 = vunpack.c.l.b16 %v411
    %v668 = vunpack.c.l.b16 %v412
    %v669 = vunpack.c.l.b16 %v413
    %v670 = vunpack.c.l.b16 %v414
    %v671 = vunpack.c.l.b16 %v415
    %v672 = vunpack.c.l.b16 %v416
    %v673 = vunpack.c.l.b16 %v417
    %v674 = vunpack.c.l.b16 %v418
    %v675 = vunpack.c.l.b16 %v419
    %v676 = vunpack.c.l.b16 %v420
    %v677 = vunpack.c.l.b16 %v421
    %v678 = vunpack.c.l.b16 %v422
    %v679 = vunpack.c.l.b16 %v423
    %v680 = vunpack.c.l.b16 %v424
    %v681 = vunpack.c.l.b16 %v425
    %v682 = vunpack.c.l.b16 %v426
    %v683 = vunpack.c.l.b16 %v427
    %v684 = vunpack.c.l.b16 %v428
    %v685 = vunpack.c.l.b16 %v429
    %v686 = vunpack.c.l.b16 %v430
    %v687 = vunpack.c.l.b16 %v431
    %v688 = vunpack.c.l.b16 %v432
    %v689 = vunpack.c.l.b16 %v433
    %v690 = vunpack.c.l.b16 %v434
    %v691 = vunpack.c.l.b16 %v435
    %v692 = vunpack.c.l.b16 %v436
    %v693 = vunpack.c.l.b16 %v437
    %v694 = vunpack.c.l.b16 %v438
    %v695 = vunpack.c.l.b16 %v439
    %v696 = vunpack.c.l.b16 %v440
    %v697 = vunpack.c.l.b16 %v441
    %v698 = vunpack.c.l.b16 %v442
    %v699 = vunpack.c.l.b16 %v443
    %v700 = vunpack.c.l.b16 %v444
    %v701 = vunpack.c.l.b16 %v445
    %v702 = vunpack.c.l.b16 %v446
    %v703 = vunpack.c.l.b16 %v447
    %v704 = vunpack.c.l.b16 %v448
    %v705 = vunpack.c.l.b16 %v449
    %v706 = vunpack.c.l.b16 %v450
    %v707 = vunpack.c.l.b16 %v451
    %v708 = vunpack.c.l.b16 %v452
    %v709 = vunpack.c.l.b16 %v453
    %v710 = vunpack.c.l.b16 %v454
    %v711 = vunpack.c.l.b16 %v455
    %v712 = vunpack.c.l.b16 %v456
    %v713 = vunpack.c.l.b16 %v457
    %v714 = vunpack.c.l.b16 %v458
    %v715 = vunpack.c.l.b16 %v459
    %v716 = vunpack.c.l.b16 %v460
    %v717 = vunpack.c.l.b16 %v461
    %v718 = vunpack.c.l.b16 %v462
    %v719 = vunpack.c.l.b16 %v463
    %v720 = vunpack.c.l.b16 %v464
    %v721 = vunpack.c.l.b16 %v465
    %v722 = vunpack.c.l.b16 %v466
    %v723 = vunpack.c.l.b16 %v467
    %v724 = vunpack.c.l.b16 %v468
    %v725 = vunpack.c.l.b16 %v469
    %v726 = vunpack.c.l.b16 %v470
    %v727 = vpack.c.b16 %v600, %v599
    %v728 = vpack.c.b16 %v602, %v601
    %v729 = vpack.c.b16 %v604, %v603
    %v730 = vpack.c.b16 %v606, %v605
    %v731 = vpack.c.b16 %v608, %v607
    %v732 = vpack.c.b16 %v610, %v609
    %v733 = vpack.c.b16 %v612, %v611
    %v734 = vpack.c.b16 %v614, %v613
    %v735 = vpack.c.b16 %v616, %v615
    %v736 = vpack.c.b16 %v618, %v617
    %v737 = vpack.c.b16 %v620, %v619
    %v738 = vpack.c.b16 %v622, %v621
    %v739 = vpack.c.b16 %v624, %v623
    %v740 = vpack.c.b16 %v626, %v625
    %v741 = vpack.c.b16 %v628, %v627
    %v742 = vpack.c.b16 %v630, %v629
    %v743 = vpack.c.b16 %v632, %v631
    %v744 = vpack.c.b16 %v634, %v633
    %v745 = vpack.c.b16 %v636, %v635
    %v746 = vpack.c.b16 %v638, %v637
    %v747 = vpack.c.b16 %v640, %v639
    %v748 = vpack.c.b16 %v642, %v641
    %v749 = vpack.c.b16 %v644, %v643
    %v750 = vpack.c.b16 %v646, %v645
    %v751 = vpack.c.b16 %v648, %v647
    %v752 = vpack.c.b16 %v650, %v649
    %v753 = vpack.c.b16 %v652, %v651
    %v754 = vpack.c.b16 %v654, %v653
    %v755 = vpack.c.b16 %v656, %v655
    %v756 = vpack.c.b16 %v658, %v657
    %v757 = vpack.c.b16 %v660, %v659
    %v758 = vpack.c.b16 %v662, %v661
    %v759 = vpack.c.b16 %v664, %v663
    %v760 = vpack.c.b16 %v666, %v665
    %v761 = vpack.c.b16 %v668, %v667
    %v762 = vpack.c.b16 %v670, %v669
    %v763 = vpack.c.b16 %v672, %v671
    %v764 = vpack.c.b16 %v674, %v673
    %v765 = vpack.c.b16 %v676, %v675
    %v766 = vpack.c.b16 %v678, %v677
    %v767 = vpack.c.b16 %v680, %v679
    %v768 = vpack.c.b16 %v682, %v681
    %v769 = vpack.c.b16 %v684, %v683
    %v770 = vpack.c.b16 %v686, %v685
    %v771 = vpack.c.b16 %v688, %v687
    %v772 = vpack.c.b16 %v690, %v689
    %v773 = vpack.c.b16 %v692, %v691
    %v774 = vpack.c.b16 %v694, %v693
    %v775 = vpack.c.b16 %v696, %v695
    %v776 = vpack.c.b16 %v698, %v697
    %v777 = vpack.c.b16 %v700, %v699
    %v778 = vpack.c.b16 %v702, %v701
    %v779 = vpack.c.b16 %v704, %v703
    %v780 = vpack.c.b16 %v706, %v705
    %v781 = vpack.c.b16 %v708, %v707
    %v782 = vpack.c.b16 %v710, %v709
    %v783 = vpack.c.b16 %v712, %v711
    %v784 = vpack.c.b16 %v714, %v713
    %v785 = vpack.c.b16 %v716, %v715
    %v786 = vpack.c.b16 %v718, %v717
    %v787 = vpack.c.b16 %v720, %v719
    %v788 = vpack.c.b16 %v722, %v721
    %v789 = vpack.c.b16 %v724, %v723
    %v790 = vpack.c.b16 %v726, %v725
    %855 = vmatprep.subr.bf16.mxu0 0
    %856 = vmatpush1.bf16.msra.mxu0 %v727
    %857 = vmatprep.subr.bf16.mxu0 0
    %858 = vmatpush1.bf16.msra.mxu0 %v728
    %859 = vmatprep.subr.bf16.mxu0 0
    %860 = vmatpush1.bf16.msra.mxu0 %v729
    %861 = vmatprep.subr.bf16.mxu0 0
    %862 = vmatpush1.bf16.msra.mxu0 %v730
    %863 = vmatprep.subr.bf16.mxu0 0
    %864 = vmatpush1.bf16.msra.mxu0 %v731
    %865 = vmatprep.subr.bf16.mxu0 0
    %866 = vmatpush1.bf16.msra.mxu0 %v732
    %867 = vmatprep.subr.bf16.mxu0 0
    %868 = vmatpush1.bf16.msra.mxu0 %v733
    %869 = vmatprep.subr.bf16.mxu0 0
    %870 = vmatpush1.bf16.msra.mxu0 %v734
    %871 = vmatprep.subr.bf16.mxu0 0
    %872 = vmatpush1.bf16.msra.mxu0 %v735
    %873 = vmatprep.subr.bf16.mxu0 0
    %874 = vmatpush1.bf16.msra.mxu0 %v736
    %875 = vmatprep.subr.bf16.mxu0 0
    %876 = vmatpush1.bf16.msra.mxu0 %v737
    %877 = vmatprep.subr.bf16.mxu0 0
    %878 = vmatpush1.bf16.msra.mxu0 %v738
    %879 = vmatprep.subr.bf16.mxu0 0
    %880 = vmatpush1.bf16.msra.mxu0 %v739
    %881 = vmatprep.subr.bf16.mxu0 0
    %882 = vmatpush1.bf16.msra.mxu0 %v740
    %883 = vmatprep.subr.bf16.mxu0 0
    %884 = vmatpush1.bf16.msra.mxu0 %v741
    %885 = vmatprep.subr.bf16.mxu0 0
    %886 = vmatpush1.bf16.msra.mxu0 %v742
    %887 = vmatprep.mubr.bf16.mxu0 %v102
    %888 = vmatmul.mubr.bf16.gmra.mrb[0].mxu0 %v101
    %v889 = vpop.f32.mrb[0].mxu0
    %v890 = vadd.f32 0.0, %v889
    %v891 = vpop.f32.mrb[0].mxu0
    %v892 = vpop.f32.mrb[0].mxu0
    %v893 = vpop.f32.mrb[0].mxu0
    %894 = vdwg.mxu0
    %895 = vmatprep.subr.bf16.mxu0 0
    %896 = vmatpush1.bf16.msra.mxu0 %v743
    %897 = vmatprep.subr.bf16.mxu0 0
    %898 = vmatpush1.bf16.msra.mxu0 %v744
    %899 = vmatprep.subr.bf16.mxu0 0
    %900 = vmatpush1.bf16.msra.mxu0 %v745
    %901 = vmatprep.subr.bf16.mxu0 0
    %902 = vmatpush1.bf16.msra.mxu0 %v746
    %903 = vmatprep.subr.bf16.mxu0 0
    %904 = vmatpush1.bf16.msra.mxu0 %v747
    %905 = vmatprep.subr.bf16.mxu0 0
    %906 = vmatpush1.bf16.msra.mxu0 %v748
    %907 = vmatprep.subr.bf16.mxu0 0
    %908 = vmatpush1.bf16.msra.mxu0 %v749
    %909 = vmatprep.subr.bf16.mxu0 0
    %910 = vmatpush1.bf16.msra.mxu0 %v750
    %911 = vmatprep.subr.bf16.mxu0 0
    %912 = vmatpush1.bf16.msra.mxu0 %v751
    %913 = vmatprep.subr.bf16.mxu0 0
    %914 = vmatpush1.bf16.msra.mxu0 %v752
    %915 = vmatprep.subr.bf16.mxu0 0
    %916 = vmatpush1.bf16.msra.mxu0 %v753
    %917 = vmatprep.subr.bf16.mxu0 0
    %918 = vmatpush1.bf16.msra.mxu0 %v754
    %919 = vmatprep.subr.bf16.mxu0 0
    %920 = vmatpush1.bf16.msra.mxu0 %v755
    %921 = vmatprep.subr.bf16.mxu0 0
    %922 = vmatpush1.bf16.msra.mxu0 %v756
    %923 = vmatprep.subr.bf16.mxu0 0
    %924 = vmatpush1.bf16.msra.mxu0 %v757
    %925 = vmatprep.subr.bf16.mxu0 0
    %926 = vmatpush1.bf16.msra.mxu0 %v758
    %927 = vmatprep.mubr.bf16.mxu0 %v104
    %928 = vmatmul.mubr.bf16.gmra.mrb[0].mxu0 %v103
    %v929 = vpop.f32.mrb[0].mxu0
    %v930 = vadd.f32 %v890, %v929
    %v931 = vpop.f32.mrb[0].mxu0
    %v932 = vpop.f32.mrb[0].mxu0
    %v933 = vpop.f32.mrb[0].mxu0
    %934 = vdwg.mxu0
    %935 = vmatprep.subr.bf16.mxu0 0
    %936 = vmatpush1.bf16.msra.mxu0 %v759
    %937 = vmatprep.subr.bf16.mxu0 0
    %938 = vmatpush1.bf16.msra.mxu0 %v760
    %939 = vmatprep.subr.bf16.mxu0 0
    %940 = vmatpush1.bf16.msra.mxu0 %v761
    %941 = vmatprep.subr.bf16.mxu0 0
    %942 = vmatpush1.bf16.msra.mxu0 %v762
    %943 = vmatprep.subr.bf16.mxu0 0
    %944 = vmatpush1.bf16.msra.mxu0 %v763
    %945 = vmatprep.subr.bf16.mxu0 0
    %946 = vmatpush1.bf16.msra.mxu0 %v764
    %947 = vmatprep.subr.bf16.mxu0 0
    %948 = vmatpush1.bf16.msra.mxu0 %v765
    %949 = vmatprep.subr.bf16.mxu0 0
    %950 = vmatpush1.bf16.msra.mxu0 %v766
    %951 = vmatprep.subr.bf16.mxu0 0
    %952 = vmatpush1.bf16.msra.mxu0 %v767
    %953 = vmatprep.subr.bf16.mxu0 0
    %954 = vmatpush1.bf16.msra.mxu0 %v768
    %955 = vmatprep.subr.bf16.mxu0 0
    %956 = vmatpush1.bf16.msra.mxu0 %v769
    %957 = vmatprep.subr.bf16.mxu0 0
    %958 = vmatpush1.bf16.msra.mxu0 %v770
    %959 = vmatprep.subr.bf16.mxu0 0
    %960 = vmatpush1.bf16.msra.mxu0 %v771
    %961 = vmatprep.subr.bf16.mxu0 0
    %962 = vmatpush1.bf16.msra.mxu0 %v772
    %963 = vmatprep.subr.bf16.mxu0 0
    %964 = vmatpush1.bf16.msra.mxu0 %v773
    %965 = vmatprep.subr.bf16.mxu0 0
    %966 = vmatpush1.bf16.msra.mxu0 %v774
    %967 = vmatprep.mubr.bf16.mxu0 %v106
    %968 = vmatmul.mubr.bf16.gmra.mrb[0].mxu0 %v105
    %v969 = vpop.f32.mrb[0].mxu0
    %v970 = vadd.f32 %v930, %v969
    %v971 = vpop.f32.mrb[0].mxu0
    %v972 = vpop.f32.mrb[0].mxu0
    %v973 = vpop.f32.mrb[0].mxu0
    %974 = vdwg.mxu0
    %975 = vmatprep.subr.bf16.mxu0 0
    %976 = vmatpush1.bf16.msra.mxu0 %v775
    %977 = vmatprep.subr.bf16.mxu0 0
    %978 = vmatpush1.bf16.msra.mxu0 %v776
    %979 = vmatprep.subr.bf16.mxu0 0
    %980 = vmatpush1.bf16.msra.mxu0 %v777
    %981 = vmatprep.subr.bf16.mxu0 0
    %982 = vmatpush1.bf16.msra.mxu0 %v778
    %983 = vmatprep.subr.bf16.mxu0 0
    %984 = vmatpush1.bf16.msra.mxu0 %v779
    %985 = vmatprep.subr.bf16.mxu0 0
    %986 = vmatpush1.bf16.msra.mxu0 %v780
    %987 = vmatprep.subr.bf16.mxu0 0
    %988 = vmatpush1.bf16.msra.mxu0 %v781
    %989 = vmatprep.subr.bf16.mxu0 0
    %990 = vmatpush1.bf16.msra.mxu0 %v782
    %991 = vmatprep.subr.bf16.mxu0 0
    %992 = vmatpush1.bf16.msra.mxu0 %v783
    %993 = vmatprep.subr.bf16.mxu0 0
    %994 = vmatpush1.bf16.msra.mxu0 %v784
    %995 = vmatprep.subr.bf16.mxu0 0
    %996 = vmatpush1.bf16.msra.mxu0 %v785
    %997 = vmatprep.subr.bf16.mxu0 0
    %998 = vmatpush1.bf16.msra.mxu0 %v786
    %999 = vmatprep.subr.bf16.mxu0 0
    %1000 = vmatpush1.bf16.msra.mxu0 %v787
    %1001 = vmatprep.subr.bf16.mxu0 0
    %1002 = vmatpush1.bf16.msra.mxu0 %v788
    %1003 = vmatprep.subr.bf16.mxu0 0
    %1004 = vmatpush1.bf16.msra.mxu0 %v789
    %1005 = vmatprep.subr.bf16.mxu0 0
    %1006 = vmatpush1.bf16.msra.mxu0 %v790
    %1007 = vmatprep.mubr.bf16.mxu0 %v108
    %1008 = vmatmul.mubr.bf16.gmra.mrb[0].mxu0 %v107
    %v1009 = vpop.f32.mrb[0].mxu0
    %v1010 = vadd.f32 %v970, %v1009
    %v1011 = vpop.f32.mrb[0].mxu0
    %v1012 = vpop.f32.mrb[0].mxu0
    %v1013 = vpop.f32.mrb[0].mxu0
    %1014 = vdwg.mxu0
    %v1143 = vunpack.c.l.b16 %v215
    %v1144 = vunpack.c.l.b16 %v216
    %v1145 = vunpack.c.l.b16 %v217
    %v1146 = vunpack.c.l.b16 %v218
    %v1147 = vunpack.c.l.b16 %v219
    %v1148 = vunpack.c.l.b16 %v220
    %v1149 = vunpack.c.l.b16 %v221
    %v1150 = vunpack.c.l.b16 %v222
    %v1151 = vunpack.c.l.b16 %v223
    %v1152 = vunpack.c.l.b16 %v224
    %v1153 = vunpack.c.l.b16 %v225
    %v1154 = vunpack.c.l.b16 %v226
    %v1155 = vunpack.c.l.b16 %v227
    %v1156 = vunpack.c.l.b16 %v228
    %v1157 = vunpack.c.l.b16 %v229
    %v1158 = vunpack.c.l.b16 %v230
    %v1159 = vunpack.c.l.b16 %v231
    %v1160 = vunpack.c.l.b16 %v232
    %v1161 = vunpack.c.l.b16 %v233
    %v1162 = vunpack.c.l.b16 %v234
    %v1163 = vunpack.c.l.b16 %v235
    %v1164 = vunpack.c.l.b16 %v236
    %v1165 = vunpack.c.l.b16 %v237
    %v1166 = vunpack.c.l.b16 %v238
    %v1167 = vunpack.c.l.b16 %v239
    %v1168 = vunpack.c.l.b16 %v240
    %v1169 = vunpack.c.l.b16 %v241
    %v1170 = vunpack.c.l.b16 %v242
    %v1171 = vunpack.c.l.b16 %v243
    %v1172 = vunpack.c.l.b16 %v244
    %v1173 = vunpack.c.l.b16 %v245
    %v1174 = vunpack.c.l.b16 %v246
    %v1175 = vunpack.c.l.b16 %v247
    %v1176 = vunpack.c.l.b16 %v248
    %v1177 = vunpack.c.l.b16 %v249
    %v1178 = vunpack.c.l.b16 %v250
    %v1179 = vunpack.c.l.b16 %v251
    %v1180 = vunpack.c.l.b16 %v252
    %v1181 = vunpack.c.l.b16 %v253
    %v1182 = vunpack.c.l.b16 %v254
    %v1183 = vunpack.c.l.b16 %v255
    %v1184 = vunpack.c.l.b16 %v256
    %v1185 = vunpack.c.l.b16 %v257
    %v1186 = vunpack.c.l.b16 %v258
    %v1187 = vunpack.c.l.b16 %v259
    %v1188 = vunpack.c.l.b16 %v260
    %v1189 = vunpack.c.l.b16 %v261
    %v1190 = vunpack.c.l.b16 %v262
    %v1191 = vunpack.c.l.b16 %v263
    %v1192 = vunpack.c.l.b16 %v264
    %v1193 = vunpack.c.l.b16 %v265
    %v1194 = vunpack.c.l.b16 %v266
    %v1195 = vunpack.c.l.b16 %v267
    %v1196 = vunpack.c.l.b16 %v268
    %v1197 = vunpack.c.l.b16 %v269
    %v1198 = vunpack.c.l.b16 %v270
    %v1199 = vunpack.c.l.b16 %v271
    %v1200 = vunpack.c.l.b16 %v272
    %v1201 = vunpack.c.l.b16 %v273
    %v1202 = vunpack.c.l.b16 %v274
    %v1203 = vunpack.c.l.b16 %v275
    %v1204 = vunpack.c.l.b16 %v276
    %v1205 = vunpack.c.l.b16 %v277
    %v1206 = vunpack.c.l.b16 %v278
    %v1207 = vunpack.c.l.b16 %v279
    %v1208 = vunpack.c.l.b16 %v280
    %v1209 = vunpack.c.l.b16 %v281
    %v1210 = vunpack.c.l.b16 %v282
    %v1211 = vunpack.c.l.b16 %v283
    %v1212 = vunpack.c.l.b16 %v284
    %v1213 = vunpack.c.l.b16 %v285
    %v1214 = vunpack.c.l.b16 %v286
    %v1215 = vunpack.c.l.b16 %v287
    %v1216 = vunpack.c.l.b16 %v288
    %v1217 = vunpack.c.l.b16 %v289
    %v1218 = vunpack.c.l.b16 %v290
    %v1219 = vunpack.c.l.b16 %v291
    %v1220 = vunpack.c.l.b16 %v292
    %v1221 = vunpack.c.l.b16 %v293
    %v1222 = vunpack.c.l.b16 %v294
    %v1223 = vunpack.c.l.b16 %v295
    %v1224 = vunpack.c.l.b16 %v296
    %v1225 = vunpack.c.l.b16 %v297
    %v1226 = vunpack.c.l.b16 %v298
    %v1227 = vunpack.c.l.b16 %v299
    %v1228 = vunpack.c.l.b16 %v300
    %v1229 = vunpack.c.l.b16 %v301
    %v1230 = vunpack.c.l.b16 %v302
    %v1231 = vunpack.c.l.b16 %v303
    %v1232 = vunpack.c.l.b16 %v304
    %v1233 = vunpack.c.l.b16 %v305
    %v1234 = vunpack.c.l.b16 %v306
    %v1235 = vunpack.c.l.b16 %v307
    %v1236 = vunpack.c.l.b16 %v308
    %v1237 = vunpack.c.l.b16 %v309
    %v1238 = vunpack.c.l.b16 %v310
    %v1239 = vunpack.c.l.b16 %v311
    %v1240 = vunpack.c.l.b16 %v312
    %v1241 = vunpack.c.l.b16 %v313
    %v1242 = vunpack.c.l.b16 %v314
    %v1243 = vunpack.c.l.b16 %v315
    %v1244 = vunpack.c.l.b16 %v316
    %v1245 = vunpack.c.l.b16 %v317
    %v1246 = vunpack.c.l.b16 %v318
    %v1247 = vunpack.c.l.b16 %v319
    %v1248 = vunpack.c.l.b16 %v320
    %v1249 = vunpack.c.l.b16 %v321
    %v1250 = vunpack.c.l.b16 %v322
    %v1251 = vunpack.c.l.b16 %v323
    %v1252 = vunpack.c.l.b16 %v324
    %v1253 = vunpack.c.l.b16 %v325
    %v1254 = vunpack.c.l.b16 %v326
    %v1255 = vunpack.c.l.b16 %v327
    %v1256 = vunpack.c.l.b16 %v328
    %v1257 = vunpack.c.l.b16 %v329
    %v1258 = vunpack.c.l.b16 %v330
    %v1259 = vunpack.c.l.b16 %v331
    %v1260 = vunpack.c.l.b16 %v332
    %v1261 = vunpack.c.l.b16 %v333
    %v1262 = vunpack.c.l.b16 %v334
    %v1263 = vunpack.c.l.b16 %v335
    %v1264 = vunpack.c.l.b16 %v336
    %v1265 = vunpack.c.l.b16 %v337
    %v1266 = vunpack.c.l.b16 %v338
    %v1267 = vunpack.c.l.b16 %v339
    %v1268 = vunpack.c.l.b16 %v340
    %v1269 = vunpack.c.l.b16 %v341
    %v1270 = vunpack.c.l.b16 %v342
    %v1271 = vpack.c.b16 %v1144, %v1143
    %v1272 = vpack.c.b16 %v1146, %v1145
    %v1273 = vpack.c.b16 %v1148, %v1147
    %v1274 = vpack.c.b16 %v1150, %v1149
    %v1275 = vpack.c.b16 %v1152, %v1151
    %v1276 = vpack.c.b16 %v1154, %v1153
    %v1277 = vpack.c.b16 %v1156, %v1155
    %v1278 = vpack.c.b16 %v1158, %v1157
    %v1279 = vpack.c.b16 %v1160, %v1159
    %v1280 = vpack.c.b16 %v1162, %v1161
    %v1281 = vpack.c.b16 %v1164, %v1163
    %v1282 = vpack.c.b16 %v1166, %v1165
    %v1283 = vpack.c.b16 %v1168, %v1167
    %v1284 = vpack.c.b16 %v1170, %v1169
    %v1285 = vpack.c.b16 %v1172, %v1171
    %v1286 = vpack.c.b16 %v1174, %v1173
    %v1287 = vpack.c.b16 %v1176, %v1175
    %v1288 = vpack.c.b16 %v1178, %v1177
    %v1289 = vpack.c.b16 %v1180, %v1179
    %v1290 = vpack.c.b16 %v1182, %v1181
    %v1291 = vpack.c.b16 %v1184, %v1183
    %v1292 = vpack.c.b16 %v1186, %v1185
    %v1293 = vpack.c.b16 %v1188, %v1187
    %v1294 = vpack.c.b16 %v1190, %v1189
    %v1295 = vpack.c.b16 %v1192, %v1191
    %v1296 = vpack.c.b16 %v1194, %v1193
    %v1297 = vpack.c.b16 %v1196, %v1195
    %v1298 = vpack.c.b16 %v1198, %v1197
    %v1299 = vpack.c.b16 %v1200, %v1199
    %v1300 = vpack.c.b16 %v1202, %v1201
    %v1301 = vpack.c.b16 %v1204, %v1203
    %v1302 = vpack.c.b16 %v1206, %v1205
    %v1303 = vpack.c.b16 %v1208, %v1207
    %v1304 = vpack.c.b16 %v1210, %v1209
    %v1305 = vpack.c.b16 %v1212, %v1211
    %v1306 = vpack.c.b16 %v1214, %v1213
    %v1307 = vpack.c.b16 %v1216, %v1215
    %v1308 = vpack.c.b16 %v1218, %v1217
    %v1309 = vpack.c.b16 %v1220, %v1219
    %v1310 = vpack.c.b16 %v1222, %v1221
    %v1311 = vpack.c.b16 %v1224, %v1223
    %v1312 = vpack.c.b16 %v1226, %v1225
    %v1313 = vpack.c.b16 %v1228, %v1227
    %v1314 = vpack.c.b16 %v1230, %v1229
    %v1315 = vpack.c.b16 %v1232, %v1231
    %v1316 = vpack.c.b16 %v1234, %v1233
    %v1317 = vpack.c.b16 %v1236, %v1235
    %v1318 = vpack.c.b16 %v1238, %v1237
    %v1319 = vpack.c.b16 %v1240, %v1239
    %v1320 = vpack.c.b16 %v1242, %v1241
    %v1321 = vpack.c.b16 %v1244, %v1243
    %v1322 = vpack.c.b16 %v1246, %v1245
    %v1323 = vpack.c.b16 %v1248, %v1247
    %v1324 = vpack.c.b16 %v1250, %v1249
    %v1325 = vpack.c.b16 %v1252, %v1251
    %v1326 = vpack.c.b16 %v1254, %v1253
    %v1327 = vpack.c.b16 %v1256, %v1255
    %v1328 = vpack.c.b16 %v1258, %v1257
    %v1329 = vpack.c.b16 %v1260, %v1259
    %v1330 = vpack.c.b16 %v1262, %v1261
    %v1331 = vpack.c.b16 %v1264, %v1263
    %v1332 = vpack.c.b16 %v1266, %v1265
    %v1333 = vpack.c.b16 %v1268, %v1267
    %v1334 = vpack.c.b16 %v1270, %v1269
    %1399 = vmatprep.subr.bf16.mxu0 0
    %1400 = vmatpush1.bf16.msra.mxu0 %v1271
    %1401 = vmatprep.subr.bf16.mxu0 0
    %1402 = vmatpush1.bf16.msra.mxu0 %v1272
    %1403 = vmatprep.subr.bf16.mxu0 0
    %1404 = vmatpush1.bf16.msra.mxu0 %v1273
    %1405 = vmatprep.subr.bf16.mxu0 0
    %1406 = vmatpush1.bf16.msra.mxu0 %v1274
    %1407 = vmatprep.subr.bf16.mxu0 0
    %1408 = vmatpush1.bf16.msra.mxu0 %v1275
    %1409 = vmatprep.subr.bf16.mxu0 0
    %1410 = vmatpush1.bf16.msra.mxu0 %v1276
    %1411 = vmatprep.subr.bf16.mxu0 0
    %1412 = vmatpush1.bf16.msra.mxu0 %v1277
    %1413 = vmatprep.subr.bf16.mxu0 0
    %1414 = vmatpush1.bf16.msra.mxu0 %v1278
    %1415 = vmatprep.subr.bf16.mxu0 0
    %1416 = vmatpush1.bf16.msra.mxu0 %v1279
    %1417 = vmatprep.subr.bf16.mxu0 0
    %1418 = vmatpush1.bf16.msra.mxu0 %v1280
    %1419 = vmatprep.subr.bf16.mxu0 0
    %1420 = vmatpush1.bf16.msra.mxu0 %v1281
    %1421 = vmatprep.subr.bf16.mxu0 0
    %1422 = vmatpush1.bf16.msra.mxu0 %v1282
    %1423 = vmatprep.subr.bf16.mxu0 0
    %1424 = vmatpush1.bf16.msra.mxu0 %v1283
    %1425 = vmatprep.subr.bf16.mxu0 0
    %1426 = vmatpush1.bf16.msra.mxu0 %v1284
    %1427 = vmatprep.subr.bf16.mxu0 0
    %1428 = vmatpush1.bf16.msra.mxu0 %v1285
    %1429 = vmatprep.subr.bf16.mxu0 0
    %1430 = vmatpush1.bf16.msra.mxu0 %v1286
    %1431 = vmatprep.mubr.bf16.mxu0 %v102
    %1432 = vmatmul.mubr.bf16.gmra.mrb[0].mxu0 %v101
    %v1433 = vpop.f32.mrb[0].mxu0
    %v1434 = vadd.f32 %v1010, %v1433
    %v1435 = vpop.f32.mrb[0].mxu0
    %v1436 = vpop.f32.mrb[0].mxu0
    %v1437 = vpop.f32.mrb[0].mxu0
    %1438 = vdwg.mxu0
    %1439 = vmatprep.subr.bf16.mxu0 0
    %1440 = vmatpush1.bf16.msra.mxu0 %v1287
    %1441 = vmatprep.subr.bf16.mxu0 0
    %1442 = vmatpush1.bf16.msra.mxu0 %v1288
    %1443 = vmatprep.subr.bf16.mxu0 0
    %1444 = vmatpush1.bf16.msra.mxu0 %v1289
    %1445 = vmatprep.subr.bf16.mxu0 0
    %1446 = vmatpush1.bf16.msra.mxu0 %v1290
    %1447 = vmatprep.subr.bf16.mxu0 0
    %1448 = vmatpush1.bf16.msra.mxu0 %v1291
    %1449 = vmatprep.subr.bf16.mxu0 0
    %1450 = vmatpush1.bf16.msra.mxu0 %v1292
    %1451 = vmatprep.subr.bf16.mxu0 0
    %1452 = vmatpush1.bf16.msra.mxu0 %v1293
    %1453 = vmatprep.subr.bf16.mxu0 0
    %1454 = vmatpush1.bf16.msra.mxu0 %v1294
    %1455 = vmatprep.subr.bf16.mxu0 0
    %1456 = vmatpush1.bf16.msra.mxu0 %v1295
    %1457 = vmatprep.subr.bf16.mxu0 0
    %1458 = vmatpush1.bf16.msra.mxu0 %v1296
    %1459 = vmatprep.subr.bf16.mxu0 0
    %1460 = vmatpush1.bf16.msra.mxu0 %v1297
    %1461 = vmatprep.subr.bf16.mxu0 0
    %1462 = vmatpush1.bf16.msra.mxu0 %v1298
    %1463 = vmatprep.subr.bf16.mxu0 0
    %1464 = vmatpush1.bf16.msra.mxu0 %v1299
    %1465 = vmatprep.subr.bf16.mxu0 0
    %1466 = vmatpush1.bf16.msra.mxu0 %v1300
    %1467 = vmatprep.subr.bf16.mxu0 0
    %1468 = vmatpush1.bf16.msra.mxu0 %v1301
    %1469 = vmatprep.subr.bf16.mxu0 0
    %1470 = vmatpush1.bf16.msra.mxu0 %v1302
    %1471 = vmatprep.mubr.bf16.mxu0 %v104
    %1472 = vmatmul.mubr.bf16.gmra.mrb[0].mxu0 %v103
    %v1473 = vpop.f32.mrb[0].mxu0
    %v1474 = vadd.f32 %v1434, %v1473
    %v1475 = vpop.f32.mrb[0].mxu0
    %v1476 = vpop.f32.mrb[0].mxu0
    %v1477 = vpop.f32.mrb[0].mxu0
    %1478 = vdwg.mxu0
    %1479 = vmatprep.subr.bf16.mxu0 0
    %1480 = vmatpush1.bf16.msra.mxu0 %v1303
    %1481 = vmatprep.subr.bf16.mxu0 0
    %1482 = vmatpush1.bf16.msra.mxu0 %v1304
    %1483 = vmatprep.subr.bf16.mxu0 0
    %1484 = vmatpush1.bf16.msra.mxu0 %v1305
    %1485 = vmatprep.subr.bf16.mxu0 0
    %1486 = vmatpush1.bf16.msra.mxu0 %v1306
    %1487 = vmatprep.subr.bf16.mxu0 0
    %1488 = vmatpush1.bf16.msra.mxu0 %v1307
    %1489 = vmatprep.subr.bf16.mxu0 0
    %1490 = vmatpush1.bf16.msra.mxu0 %v1308
    %1491 = vmatprep.subr.bf16.mxu0 0
    %1492 = vmatpush1.bf16.msra.mxu0 %v1309
    %1493 = vmatprep.subr.bf16.mxu0 0
    %1494 = vmatpush1.bf16.msra.mxu0 %v1310
    %1495 = vmatprep.subr.bf16.mxu0 0
    %1496 = vmatpush1.bf16.msra.mxu0 %v1311
    %1497 = vmatprep.subr.bf16.mxu0 0
    %1498 = vmatpush1.bf16.msra.mxu0 %v1312
    %1499 = vmatprep.subr.bf16.mxu0 0
    %1500 = vmatpush1.bf16.msra.mxu0 %v1313
    %1501 = vmatprep.subr.bf16.mxu0 0
    %1502 = vmatpush1.bf16.msra.mxu0 %v1314
    %1503 = vmatprep.subr.bf16.mxu0 0
    %1504 = vmatpush1.bf16.msra.mxu0 %v1315
    %1505 = vmatprep.subr.bf16.mxu0 0
    %1506 = vmatpush1.bf16.msra.mxu0 %v1316
    %1507 = vmatprep.subr.bf16.mxu0 0
    %1508 = vmatpush1.bf16.msra.mxu0 %v1317
    %1509 = vmatprep.subr.bf16.mxu0 0
    %1510 = vmatpush1.bf16.msra.mxu0 %v1318
    %1511 = vmatprep.mubr.bf16.mxu0 %v106
    %1512 = vmatmul.mubr.bf16.gmra.mrb[0].mxu0 %v105
    %v1513 = vpop.f32.mrb[0].mxu0
    %v1514 = vadd.f32 %v1474, %v1513
    %v1515 = vpop.f32.mrb[0].mxu0
    %v1516 = vpop.f32.mrb[0].mxu0
    %v1517 = vpop.f32.mrb[0].mxu0
    %1518 = vdwg.mxu0
    %1519 = vmatprep.subr.bf16.mxu0 0
    %1520 = vmatpush1.bf16.msra.mxu0 %v1319
    %1521 = vmatprep.subr.bf16.mxu0 0
    %1522 = vmatpush1.bf16.msra.mxu0 %v1320
    %1523 = vmatprep.subr.bf16.mxu0 0
    %1524 = vmatpush1.bf16.msra.mxu0 %v1321
    %1525 = vmatprep.subr.bf16.mxu0 0
    %1526 = vmatpush1.bf16.msra.mxu0 %v1322
    %1527 = vmatprep.subr.bf16.mxu0 0
    %1528 = vmatpush1.bf16.msra.mxu0 %v1323
    %1529 = vmatprep.subr.bf16.mxu0 0
    %1530 = vmatpush1.bf16.msra.mxu0 %v1324
    %1531 = vmatprep.subr.bf16.mxu0 0
    %1532 = vmatpush1.bf16.msra.mxu0 %v1325
    %1533 = vmatprep.subr.bf16.mxu0 0
    %1534 = vmatpush1.bf16.msra.mxu0 %v1326
    %1535 = vmatprep.subr.bf16.mxu0 0
    %1536 = vmatpush1.bf16.msra.mxu0 %v1327
    %1537 = vmatprep.subr.bf16.mxu0 0
    %1538 = vmatpush1.bf16.msra.mxu0 %v1328
    %1539 = vmatprep.subr.bf16.mxu0 0
    %1540 = vmatpush1.bf16.msra.mxu0 %v1329
    %1541 = vmatprep.subr.bf16.mxu0 0
    %1542 = vmatpush1.bf16.msra.mxu0 %v1330
    %1543 = vmatprep.subr.bf16.mxu0 0
    %1544 = vmatpush1.bf16.msra.mxu0 %v1331
    %1545 = vmatprep.subr.bf16.mxu0 0
    %1546 = vmatpush1.bf16.msra.mxu0 %v1332
    %1547 = vmatprep.subr.bf16.mxu0 0
    %1548 = vmatpush1.bf16.msra.mxu0 %v1333
    %1549 = vmatprep.subr.bf16.mxu0 0
    %1550 = vmatpush1.bf16.msra.mxu0 %v1334
    %1551 = vmatprep.mubr.bf16.mxu0 %v108
    %1552 = vmatmul.mubr.bf16.gmra.mrb[0].mxu0 %v107
    %v1553 = vpop.f32.mrb[0].mxu0
    %v1554 = vadd.f32 %v1514, %v1553
    %v1555 = vpop.f32.mrb[0].mxu0
    %v1556 = vpop.f32.mrb[0].mxu0
    %v1557 = vpop.f32.mrb[0].mxu0
    %1558 = vdwg.mxu0
    %1559 = vmatprep.subr.bf16.mxu0 0
    %1560 = vmatpush1.bf16.msra.mxu0 %v1271
    %1561 = vmatprep.subr.bf16.mxu0 0
    %1562 = vmatpush1.bf16.msra.mxu0 %v1272
    %1563 = vmatprep.subr.bf16.mxu0 0
    %1564 = vmatpush1.bf16.msra.mxu0 %v1273
    %1565 = vmatprep.subr.bf16.mxu0 0
    %1566 = vmatpush1.bf16.msra.mxu0 %v1274
    %1567 = vmatprep.subr.bf16.mxu0 0
    %1568 = vmatpush1.bf16.msra.mxu0 %v1275
    %1569 = vmatprep.subr.bf16.mxu0 0
    %1570 = vmatpush1.bf16.msra.mxu0 %v1276
    %1571 = vmatprep.subr.bf16.mxu0 0
    %1572 = vmatpush1.bf16.msra.mxu0 %v1277
    %1573 = vmatprep.subr.bf16.mxu0 0
    %1574 = vmatpush1.bf16.msra.mxu0 %v1278
    %1575 = vmatprep.subr.bf16.mxu0 0
    %1576 = vmatpush1.bf16.msra.mxu0 %v1279
    %1577 = vmatprep.subr.bf16.mxu0 0
    %1578 = vmatpush1.bf16.msra.mxu0 %v1280
    %1579 = vmatprep.subr.bf16.mxu0 0
    %1580 = vmatpush1.bf16.msra.mxu0 %v1281
    %1581 = vmatprep.subr.bf16.mxu0 0
    %1582 = vmatpush1.bf16.msra.mxu0 %v1282
    %1583 = vmatprep.subr.bf16.mxu0 0
    %1584 = vmatpush1.bf16.msra.mxu0 %v1283
    %1585 = vmatprep.subr.bf16.mxu0 0
    %1586 = vmatpush1.bf16.msra.mxu0 %v1284
    %1587 = vmatprep.subr.bf16.mxu0 0
    %1588 = vmatpush1.bf16.msra.mxu0 %v1285
    %1589 = vmatprep.subr.bf16.mxu0 0
    %1590 = vmatpush1.bf16.msra.mxu0 %v1286
    %1591 = vmatprep.mubr.bf16.mxu0 %v208
    %1592 = vmatmul.mubr.bf16.gmra.mrb[0].mxu0 %v207
    %v1593 = vpop.f32.mrb[0].mxu0
    %v1594 = vadd.f32 0.0, %v1593
    %v1595 = vpop.f32.mrb[0].mxu0
    %v1596 = vpop.f32.mrb[0].mxu0
    %v1597 = vpop.f32.mrb[0].mxu0
    %1598 = vdwg.mxu0
    %1599 = vmatprep.subr.bf16.mxu0 0
    %1600 = vmatpush1.bf16.msra.mxu0 %v1287
    %1601 = vmatprep.subr.bf16.mxu0 0
    %1602 = vmatpush1.bf16.msra.mxu0 %v1288
    %1603 = vmatprep.subr.bf16.mxu0 0
    %1604 = vmatpush1.bf16.msra.mxu0 %v1289
    %1605 = vmatprep.subr.bf16.mxu0 0
    %1606 = vmatpush1.bf16.msra.mxu0 %v1290
    %1607 = vmatprep.subr.bf16.mxu0 0
    %1608 = vmatpush1.bf16.msra.mxu0 %v1291
    %1609 = vmatprep.subr.bf16.mxu0 0
    %1610 = vmatpush1.bf16.msra.mxu0 %v1292
    %1611 = vmatprep.subr.bf16.mxu0 0
    %1612 = vmatpush1.bf16.msra.mxu0 %v1293
    %1613 = vmatprep.subr.bf16.mxu0 0
    %1614 = vmatpush1.bf16.msra.mxu0 %v1294
    %1615 = vmatprep.subr.bf16.mxu0 0
    %1616 = vmatpush1.bf16.msra.mxu0 %v1295
    %1617 = vmatprep.subr.bf16.mxu0 0
    %1618 = vmatpush1.bf16.msra.mxu0 %v1296
    %1619 = vmatprep.subr.bf16.mxu0 0
    %1620 = vmatpush1.bf16.msra.mxu0 %v1297
    %1621 = vmatprep.subr.bf16.mxu0 0
    %1622 = vmatpush1.bf16.msra.mxu0 %v1298
    %1623 = vmatprep.subr.bf16.mxu0 0
    %1624 = vmatpush1.bf16.msra.mxu0 %v1299
    %1625 = vmatprep.subr.bf16.mxu0 0
    %1626 = vmatpush1.bf16.msra.mxu0 %v1300
    %1627 = vmatprep.subr.bf16.mxu0 0
    %1628 = vmatpush1.bf16.msra.mxu0 %v1301
    %1629 = vmatprep.subr.bf16.mxu0 0
    %1630 = vmatpush1.bf16.msra.mxu0 %v1302
    %1631 = vmatprep.mubr.bf16.mxu0 %v210
    %1632 = vmatmul.mubr.bf16.gmra.mrb[0].mxu0 %v209
    %v1633 = vpop.f32.mrb[0].mxu0
    %v1634 = vadd.f32 %v1594, %v1633
    %v1635 = vpop.f32.mrb[0].mxu0
    %v1636 = vpop.f32.mrb[0].mxu0
    %v1637 = vpop.f32.mrb[0].mxu0
    %1638 = vdwg.mxu0
    %1639 = vmatprep.subr.bf16.mxu0 0
    %1640 = vmatpush1.bf16.msra.mxu0 %v1303
    %1641 = vmatprep.subr.bf16.mxu0 0
    %1642 = vmatpush1.bf16.msra.mxu0 %v1304
    %1643 = vmatprep.subr.bf16.mxu0 0
    %1644 = vmatpush1.bf16.msra.mxu0 %v1305
    %1645 = vmatprep.subr.bf16.mxu0 0
    %1646 = vmatpush1.bf16.msra.mxu0 %v1306
    %1647 = vmatprep.subr.bf16.mxu0 0
    %1648 = vmatpush1.bf16.msra.mxu0 %v1307
    %1649 = vmatprep.subr.bf16.mxu0 0
    %1650 = vmatpush1.bf16.msra.mxu0 %v1308
    %1651 = vmatprep.subr.bf16.mxu0 0
    %1652 = vmatpush1.bf16.msra.mxu0 %v1309
    %1653 = vmatprep.subr.bf16.mxu0 0
    %1654 = vmatpush1.bf16.msra.mxu0 %v1310
    %1655 = vmatprep.subr.bf16.mxu0 0
    %1656 = vmatpush1.bf16.msra.mxu0 %v1311
    %1657 = vmatprep.subr.bf16.mxu0 0
    %1658 = vmatpush1.bf16.msra.mxu0 %v1312
    %1659 = vmatprep.subr.bf16.mxu0 0
    %1660 = vmatpush1.bf16.msra.mxu0 %v1313
    %1661 = vmatprep.subr.bf16.mxu0 0
    %1662 = vmatpush1.bf16.msra.mxu0 %v1314
    %1663 = vmatprep.subr.bf16.mxu0 0
    %1664 = vmatpush1.bf16.msra.mxu0 %v1315
    %1665 = vmatprep.subr.bf16.mxu0 0
    %1666 = vmatpush1.bf16.msra.mxu0 %v1316
    %1667 = vmatprep.subr.bf16.mxu0 0
    %1668 = vmatpush1.bf16.msra.mxu0 %v1317
    %1669 = vmatprep.subr.bf16.mxu0 0
    %1670 = vmatpush1.bf16.msra.mxu0 %v1318
    %1671 = vmatprep.mubr.bf16.mxu0 %v212
    %1672 = vmatmul.mubr.bf16.gmra.mrb[0].mxu0 %v211
    %v1673 = vpop.f32.mrb[0].mxu0
    %v1674 = vadd.f32 %v1634, %v1673
    %v1675 = vpop.f32.mrb[0].mxu0
    %v1676 = vpop.f32.mrb[0].mxu0
    %v1677 = vpop.f32.mrb[0].mxu0
    %1678 = vdwg.mxu0
    %1679 = vmatprep.subr.bf16.mxu0 0
    %1680 = vmatpush1.bf16.msra.mxu0 %v1319
    %1681 = vmatprep.subr.bf16.mxu0 0
    %1682 = vmatpush1.bf16.msra.mxu0 %v1320
    %1683 = vmatprep.subr.bf16.mxu0 0
    %1684 = vmatpush1.bf16.msra.mxu0 %v1321
    %1685 = vmatprep.subr.bf16.mxu0 0
    %1686 = vmatpush1.bf16.msra.mxu0 %v1322
    %1687 = vmatprep.subr.bf16.mxu0 0
    %1688 = vmatpush1.bf16.msra.mxu0 %v1323
    %1689 = vmatprep.subr.bf16.mxu0 0
    %1690 = vmatpush1.bf16.msra.mxu0 %v1324
    %1691 = vmatprep.subr.bf16.mxu0 0
    %1692 = vmatpush1.bf16.msra.mxu0 %v1325
    %1693 = vmatprep.subr.bf16.mxu0 0
    %1694 = vmatpush1.bf16.msra.mxu0 %v1326
    %1695 = vmatprep.subr.bf16.mxu0 0
    %1696 = vmatpush1.bf16.msra.mxu0 %v1327
    %1697 = vmatprep.subr.bf16.mxu0 0
    %1698 = vmatpush1.bf16.msra.mxu0 %v1328
    %1699 = vmatprep.subr.bf16.mxu0 0
    %1700 = vmatpush1.bf16.msra.mxu0 %v1329
    %1701 = vmatprep.subr.bf16.mxu0 0
    %1702 = vmatpush1.bf16.msra.mxu0 %v1330
    %1703 = vmatprep.subr.bf16.mxu0 0
    %1704 = vmatpush1.bf16.msra.mxu0 %v1331
    %1705 = vmatprep.subr.bf16.mxu0 0
    %1706 = vmatpush1.bf16.msra.mxu0 %v1332
    %1707 = vmatprep.subr.bf16.mxu0 0
    %1708 = vmatpush1.bf16.msra.mxu0 %v1333
    %1709 = vmatprep.subr.bf16.mxu0 0
    %1710 = vmatpush1.bf16.msra.mxu0 %v1334
    %1711 = vmatprep.mubr.bf16.mxu0 %v214
    %1712 = vmatmul.mubr.bf16.gmra.mrb[0].mxu0 %v213
    %v1713 = vpop.f32.mrb[0].mxu0
    %v1714 = vadd.f32 %v1674, %v1713
    %v1715 = vpop.f32.mrb[0].mxu0
    %v1716 = vpop.f32.mrb[0].mxu0
    %v1717 = vpop.f32.mrb[0].mxu0
    %1718 = vdwg.mxu0
    %v1719 = vadd.f32 %v1554, %v1714
    %1720 = vst [vmem:[#allocation8] sm:$0x3] %v1719
    // Predicated region
    $region26: #{tpu_custom_call.1} parent=1 // pred_check
      _
    $region27: #{tpu_custom_call.1} parent=1 // pred_check_branch
      %1722 = sbr.rel (0) target = $region29
    $region28: #{tpu_custom_call.1} parent=1 // pred_region
      %s1724 = ssub.s32 32, 32
      %1725 = vsyncadd [#allocation4], %s1724
      %s1727 = sshll.u32 [#allocation8], 4
      %s1728 = int_to_ptr.vmem [resolvable:$true] %s1727
      %1730 = dma.vmem_to_hbm [thread:$0]  %s1728, 32, %s3, [#allocation4]
    $region29: #{tpu_custom_call.1} parent=1 // pred_fallthru
      _
    // Predicated region
    $region30: #{tpu_custom_call.1} parent=1 // pred_check
      _
    $region31: #{tpu_custom_call.1} parent=1 // pred_check_branch
      %1732 = sbr.rel (0) target = $region33
    $region32: #{tpu_custom_call.1} parent=1 // pred_region
      %1733 = dma.done [#allocation4], 32
    $region33: #{tpu_custom_call.1} parent=1 // pred_fallthru
      _
    %1734 = vsyncpa [#allocation3], 1
    %1735 = vsyncpa [#allocation6], 1
    %1736 = vsyncpa [#allocation4], 1

</llo_original>
